<compile_context>
chip_gen: v5e
topology: v5e:2x2
jax: 0.10.0
libtpu: 0.0.40
codegen_flags: <defaults>
</compile_context>

<pallas_src>
import jax
import jax.numpy as jnp
from jax.experimental import pallas as pl
from jax.experimental.pallas import tpu as pltpu


_LANE = 128
_SUBLANE = 8
_VMEM_SCOPED_CEIL = 48 * 1024 * 1024   # stay well under v7x's 64 MiB physical VMEM
_WORKSET_BUDGET = 36 * 1024 * 1024     # working-set target we tile against
_STEP_IO_TARGET = 2 * 1024 * 1024      # aim for >= ~2 MiB of input per grid step
_STEP_IO_FLOOR = 256 * 1024            # never split steps below this
_MIN_STEPS = 8                         # enough steps to feed both v7x TensorCores
_MAX_TB = 16                           # bound for the unrolled per-block batch loop


def _round_up(x, m):
    return (x + m - 1) // m * m


def _workset_bytes(tb, th, c, c_pad, io_bytes):
    w = 2 * (2 * c_pad) * c * io_bytes      # fused weight, double-buffered
    io = 2 * 2 * tb * c * th * io_bytes     # x + out tiles, double-buffered
    tmp = 6 * tb * c_pad * th * 4           # z / tanh / product f32 intermediates
    return w + io + tmp


def _pick_tiles(B, C, H, c_pad, io_bytes):
    """Choose (batch tile, lane tile) against a byte budget, not a lane cap."""
    # 1) Lane tile: as big as the budget allows, up to the full H extent.
    w_bytes = 2 * (2 * c_pad) * C * io_bytes
    per_col = 2 * 2 * C * io_bytes + 6 * c_pad * 4   # bytes per lane column (tb=1)
    avail = max(_WORKSET_BUDGET - w_bytes, _LANE * per_col)
    th_cap = max(_LANE, (avail // per_col) // _LANE * _LANE)
    th = H if H <= th_cap else th_cap                # full extent or 128-multiple

    def step_in_bytes(tb_, th_):
        return tb_ * C * th_ * io_bytes

    # 2) Batch tile: grow until each grid step reads enough bytes to amortize
    #    the ~0.35 us per-step overhead (matters for small-C PixelCNN shapes).
    tb = 1
    while (tb < min(B, _MAX_TB)
           and step_in_bytes(tb, th) < _STEP_IO_TARGET
           and _workset_bytes(tb + 1, th, C, c_pad, io_bytes) <= _WORKSET_BUDGET):
        tb += 1

    # 3) Guarantee enough grid steps so both v7x TensorCores get work: shrink
    #    the batch tile first, then the lane tile (128-aligned), with a floor.
    def steps(tb_, th_):
        return pl.cdiv(B, tb_) * pl.cdiv(H, th_)

    while tb > 1 and steps(tb, th) < _MIN_STEPS:
        tb -= 1
    while steps(tb, th) < _MIN_STEPS and th > _LANE:
        cand = max(_LANE, (th // 2) // _LANE * _LANE)
        if step_in_bytes(tb, cand) < _STEP_IO_FLOOR:
            break
        th = cand

    return tb, th, _workset_bytes(tb, th, C, c_pad, io_bytes)


def _make_kernel(c, c_pad, tb, mxu_bf16):
    def kernel(w_ref, x_ref, o_ref):
        # w_ref: (2*c_pad, C) fused [Wr ; 0.5*Wf] (zero rows pad each half to c_pad)
        # x_ref: (tb, C, tH)  channel-major slabs, H on the lane axis
        # o_ref: (tb, C, tH)
        w = w_ref[...]
        if mxu_bf16:
            w = w.astype(jnp.bfloat16)
        for b in range(tb):                      # static unroll, tb <= _MAX_TB
            x = x_ref[b]                         # (C, tH)
            if mxu_bf16:
                x = x.astype(jnp.bfloat16)
            # Single fused MXU pass, f32 accumulation: (2*c_pad, tH).
            z = jnp.dot(w, x, preferred_element_type=jnp.float32)
            real = jnp.tanh(z[:c_pad])
            # sigmoid(t) = 0.5 + 0.5*tanh(0.5*t); the inner 0.5 is folded into
            # the forget-gate rows of the fused weight -> one EUP push per gate.
            forget = 0.5 + 0.5 * jnp.tanh(z[c_pad:])
            gated = real * forget                # padded rows: tanh(0)*0.5 = 0
            o_ref[b] = gated[:c, :].astype(o_ref.dtype)
    return kernel


def gated_activation(x_nch, weights, io_dtype=None):
    """Pallas implementation of GatedActivation.forward.

    x_nch:    (B, C, H)
    weights:  (C, C, 2)  (same layout as the PyTorch nn.Parameter)
    io_dtype: optional HBM I/O dtype (e.g. jnp.bfloat16 for ~2x on this
              memory-bound op). Defaults to x_nch.dtype; gate math stays f32.
    returns:  (B, C, H) in io_dtype
    """
    B, C, H = x_nch.shape
    assert weights.shape == (C, C, 2)

    io_dtype = jnp.dtype(io_dtype) if io_dtype is not None else x_nch.dtype
    io_bytes = jnp.dtype(io_dtype).itemsize
    c_pad = _round_up(C, _SUBLANE)

    # conv1d(kernel=1): out[b, co, h] = sum_ci W[co, ci] * x[b, ci, h]
    # Fuse real/forget gates along output channels, pad each half to c_pad rows.
    wr = weights[:, :, 0]
    wf = 0.5 * weights[:, :, 1]                  # fold sigmoid's inner 0.5
    if c_pad != C:
        zpad = jnp.zeros((c_pad - C, C), weights.dtype)
        w_fused = jnp.concatenate([wr, zpad, wf, zpad], axis=0)
    else:
        w_fused = jnp.concatenate([wr, wf], axis=0)
    w_fused = w_fused.astype(io_dtype)
    x_in = x_nch.astype(io_dtype)

    # Only worth casting the MXU operands to bf16 once the matmul is big enough
    # to matter (and the inputs aren't already bf16).
    mxu_bf16 = (C >= 256) and (io_dtype == jnp.float32)

    tb, th, workset_bytes = _pick_tiles(B, C, H, c_pad, io_bytes)
    grid = (pl.cdiv(B, tb), pl.cdiv(H, th))

    vmem_limit = int(min(_VMEM_SCOPED_CEIL,
                         max(16 * 1024 * 1024, workset_bytes * 5 // 4)))

    return pl.pallas_call(
        _make_kernel(C, c_pad, tb, mxu_bf16),
        out_shape=jax.ShapeDtypeStruct((B, C, H), io_dtype),
        grid_spec=pltpu.PrefetchScalarGridSpec(
            num_scalar_prefetch=0,
            grid=grid,
            in_specs=[
                # Fused weights: constant index_map -> resident in VMEM.
                pl.BlockSpec((2 * c_pad, C), lambda b, h: (0, 0)),
                # Input slab in native NCH layout: H on the lane axis.
                pl.BlockSpec((tb, C, th), lambda b, h: (b, 0, h)),
            ],
            out_specs=pl.BlockSpec((tb, C, th), lambda b, h: (b, 0, h)),
        ),
        compiler_params=pltpu.CompilerParams(
            dimension_semantics=("parallel", "parallel"),
            vmem_limit_bytes=vmem_limit,
        ),
    )(w_fused, x_in)


def _reference(x_nch, weights):
    # Pure-JAX reference mirroring the PyTorch forward exactly.
    wr = weights[:, :, 0]  # (C_out, C_in)
    wf = weights[:, :, 1]
    real = jnp.tanh(jnp.einsum("oc,bch->boh", wr, x_nch))
    forget = jax.nn.sigmoid(jnp.einsum("oc,bch->boh", wf, x_nch))
    return real * forget


if __name__ == "__main__":
    key = jax.random.PRNGKey(0)
    kx, kw = jax.random.split(key)

    B, C, H = 2, 4, 16  # (batch, num_channels, height)
    x = jax.random.normal(kx, (B, C, H), dtype=jnp.float32)
    # Deterministic synthetic parameter init (PyTorch shape: (C, C, kernel_size*2))
    weights = 0.1 * jax.random.normal(kw, (C, C, 2), dtype=jnp.float32)

    out = gated_activation(x, weights)
    jax.block_until_ready(out)

    ref = _reference(x, weights)
    assert out.shape == (B, C, H)
    assert jnp.allclose(out, ref, atol=1e-5, rtol=1e-5), "mismatch vs reference"

    print("KERNEL_OK")
</pallas_src>

<mosaic_0001>
module attributes {stable_mosaic.version = 11 : i64} {
  func.func @kernel(%arg0: i32, %arg1: i32, %arg2: memref<16x4xf32, #tpu.memory_space<vmem>>, %arg3: memref<1x4x16xf32, #tpu.memory_space<vmem>>, %arg4: memref<1x4x16xf32, #tpu.memory_space<vmem>>) attributes {dimension_semantics = [#tpu.dimension_semantics<parallel>, #tpu.dimension_semantics<parallel>], iteration_bounds = array<i64: 2, 1>, scalar_prefetch = 0 : i64, scratch_operands = 0 : i64, tpu.core_type = #tpu.core_type<tc>, window_params = [{pipeline_mode = #tpu.pipeline_mode<synchronous>, transform_indices = @transform_0, window_bounds = array<i64: 16, 4>}, {transform_indices = @transform_1, window_bounds = array<i64: 1, 4, 16>}, {transform_indices = @transform_2, window_bounds = array<i64: 1, 4, 16>}]} {
    %c0 = arith.constant 0 : index
    %c0_0 = arith.constant 0 : index
    %0 = vector.load %arg2[%c0, %c0_0] : memref<16x4xf32, #tpu.memory_space<vmem>>, vector<16x4xf32>
    %c0_1 = arith.constant 0 : index
    %c0_2 = arith.constant 0 : index
    %c0_3 = arith.constant 0 : index
    %1 = vector.load %arg3[%c0_1, %c0_2, %c0_3] : memref<1x4x16xf32, #tpu.memory_space<vmem>>, vector<1x4x16xf32>
    %2 = vector.shape_cast %1 : vector<1x4x16xf32> to vector<4x16xf32>
    %cst = arith.constant dense<0.000000e+00> : vector<16x16xf32>
    %3 = tpu.matmul %0, %2, %cst {dimension_numbers = #tpu.dot_dimension_numbers<[1], [0], [0], [1], [0, 0, 1, 1], [], []>} : vector<16x4xf32>, vector<4x16xf32>, vector<16x16xf32> -> vector<16x16xf32>
    %4 = vector.extract_strided_slice %3 {offsets = [0, 0], sizes = [8, 16], strides = [1, 1]} : vector<16x16xf32> to vector<8x16xf32>
    %5 = math.tanh %4 : vector<8x16xf32>
    %6 = vector.extract_strided_slice %3 {offsets = [8, 0], sizes = [8, 16], strides = [1, 1]} : vector<16x16xf32> to vector<8x16xf32>
    %7 = math.tanh %6 : vector<8x16xf32>
    %cst_4 = arith.constant 5.000000e-01 : f32
    %8 = vector.broadcast %cst_4 : f32 to vector<8x16xf32>
    %9 = arith.mulf %8, %7 : vector<8x16xf32>
    %cst_5 = arith.constant 5.000000e-01 : f32
    %10 = vector.broadcast %cst_5 : f32 to vector<8x16xf32>
    %11 = arith.addf %10, %9 : vector<8x16xf32>
    %12 = arith.mulf %5, %11 : vector<8x16xf32>
    %13 = vector.extract_strided_slice %12 {offsets = [0, 0], sizes = [4, 16], strides = [1, 1]} : vector<8x16xf32> to vector<4x16xf32>
    %c0_6 = arith.constant 0 : index
    %c0_7 = arith.constant 0 : index
    %c0_8 = arith.constant 0 : index
    %14 = vector.load %arg4[%c0_6, %c0_7, %c0_8] : memref<1x4x16xf32, #tpu.memory_space<vmem>>, vector<1x4x16xf32>
    %15 = vector.shape_cast %14 : vector<1x4x16xf32> to vector<4x16xf32>
    %16 = vector.shape_cast %13 : vector<4x16xf32> to vector<1x4x16xf32>
    tpu.vector_store %arg4[%c0_6, %c0_7, %c0_8], %16 {strides = array<i32>} : memref<1x4x16xf32, #tpu.memory_space<vmem>>, vector<1x4x16xf32>,
    return
  }
  func.func @transform_0(%arg0: i32, %arg1: i32) -> (i32, i32) {
    %c0_i32 = arith.constant 0 : i32
    %c0_i32_0 = arith.constant 0 : i32
    %c0_i32_1 = arith.constant 0 : i32
    return %c0_i32, %c0_i32_0 : i32, i32
  }
  func.func @transform_1(%arg0: i32, %arg1: i32) -> (i32, i32, i32) {
    %c0_i32 = arith.constant 0 : i32
    %c0_i32_0 = arith.constant 0 : i32
    return %arg0, %c0_i32, %arg1 : i32, i32, i32
  }
  func.func @transform_2(%arg0: i32, %arg1: i32) -> (i32, i32, i32) {
    %c0_i32 = arith.constant 0 : i32
    %c0_i32_0 = arith.constant 0 : i32
    return %arg0, %c0_i32, %arg1 : i32, i32, i32
  }
}

</mosaic_0001>

<llo_original>
// kernel: tpu_custom_call.1
$region0: #{tpu_custom_call.1}
  #allocation0 [shape = 'u32[]', space=smem, size = 0x4, offset = 0x4, fixed_abs, tag = 'smem constant byte address 0x4 - core index']
  #allocation1 [shape = 'u32[72,128]{1,0:T(1,128)}', space=vmem, size = 0x9000, scoped, tag = 'internal scratch']
  %s0 = inlined_call_operand.vmem [shape: f32[16,4], index: 0, kind: input, shape index: {}]
  %s1 = inlined_call_operand.vmem [shape: f32[2,4,16], index: 1, kind: input, shape index: {}]
  %s2 = inlined_call_operand.hbm [shape: f32[2,4,16], index: 2, kind: output, shape index: {}]
  %s3 = sld [smem:[#allocation0]]
  $region41: #{tpu_custom_call.1} parent=0
    _
  %s5 = ssub.s32 1, %s3
  %s6 = scalar_select 0, %s5, %s3
  $region1: #{tpu_custom_call.1} parent=0
    #allocation2 [shape = 'u8[4096]{0}', space=vmem, size = 0x1000, scoped, tag = 'output window, operand 0']
    #allocation3 [shape = 's32[2]{0}', space=sflag, size = 0x8, scoped, tag = 'scoped memory for tpu_custom_call.1']
    %7 = vsyncpa [#allocation3], 0
    %s8 = scalar_lea.sflag [#allocation3], 1
    %9 = vsyncpa %s8, 0
    loop: start=0, step=1, limit=4
    $region2: #{tpu_custom_call.1} parent=1 // loop_pre_header
      _
    $region3: #{tpu_custom_call.1} parent=1 // loop_header
      %s11 = sphi 0, %s15
      %p12 = scmp.ge.s32.totalorder %s11, 4
      %s18 = sphi 0, %s30
      %s19 = sphi 0, %s26
      %s20 = sphi 0, %s18
      %s21 = sphi 0, %s19
      %s22 = sphi 0, %s20
      %s23 = sphi 0, %s21
      %s31 = sphi 0, %s31
      %s33 = sphi 0, %s31
      %s34 = sphi 0, %s33
      %s48 = sphi 0, %s34
      %s56 = sphi 0, %s58
      %s59 = sphi 0, %s56
      %s60 = sphi 0, %s59
      %s76 = sphi 0, %s60
      %s84 = sphi 0, %s86
      %s87 = sphi 0, %s84
      %s88 = sphi 0, %s87
      %s104 = sphi 0, %s88
    $region4: #{tpu_custom_call.1} parent=1 // loop_header_branch
      %14 = sbr.rel (%p12) target = $region8
    $region5: #{tpu_custom_call.1} parent=1 // loop_body
      %s16 = ssub.s32 %s11, 1
      %s17 = ssub.s32 %s11, 2
      %s24 = sadd.s32 1, %s19
      %p25 = scmp.ge.s32.totalorder %s24, 1
      %s26 = scalar_select %p25, 0, %s24
      %s27 = sadd.s32 1, %s18
      %s28 = scalar_select %p25, %s27, %s18
      %p29 = scmp.ge.s32.totalorder %s28, 2
      %s30 = scalar_select %p29, 0, %s28
      %s32 = sadd.s32 %s31, 1
      %p35 = scmp.eq.s32.totalorder %s11, 1
      %p36 = scmp.ne.s32.totalorder %s31, %s33
      %p37 = scmp.eq.s32.totalorder %s11, 0
      %p38 = por %p36, %p37
      %p39 = scmp.ne.s32.totalorder %s31, %s33
      %p40 = scmp.eq.s32.totalorder %s16, 1
      %p41 = por %p39, %p40
      %p42 = scmp.ne.s32.totalorder %s33, %s34
      %p43 = scmp.eq.s32.totalorder %s16, 0
      %p44 = por %p42, %p43
      %p45 = scmp.ne.s32.totalorder %s33, %s34
      %p46 = scmp.eq.s32.totalorder %s17, 1
      %p47 = por %p45, %p46
      %p49 = scmp.ne.s32.totalorder %s34, %s48
      %p50 = scmp.eq.s32.totalorder %s17, 0
      %p51 = por %p49, %p50
      %s52 = ssub.s32 %s18, %s30
      %s53 = ssub.s32 %s19, %s26
      %s54 = sor.u32 %s52, %s53
      %p55 = scmp.eq.s32.totalorder %s54, 0
      %s57 = sadd.s32 %s56, 1
      %s58 = scalar_select %p55, %s56, %s57
      %p61 = pneg %p55
      %p62 = scmp.eq.s32.totalorder %s11, 1
      %p63 = por %p61, %p62
      %p64 = scmp.ne.s32.totalorder %s56, %s59
      %p65 = scmp.eq.s32.totalorder %s11, 0
      %p66 = por %p64, %p65
      %p67 = scmp.ne.s32.totalorder %s56, %s59
      %p68 = scmp.eq.s32.totalorder %s16, 1
      %p69 = por %p67, %p68
      %p70 = scmp.ne.s32.totalorder %s59, %s60
      %p71 = scmp.eq.s32.totalorder %s16, 0
      %p72 = por %p70, %p71
      %p73 = scmp.ne.s32.totalorder %s59, %s60
      %p74 = scmp.eq.s32.totalorder %s17, 1
      %p75 = por %p73, %p74
      %p77 = scmp.ne.s32.totalorder %s60, %s76
      %p78 = scmp.eq.s32.totalorder %s17, 0
      %p79 = por %p77, %p78
      %s80 = ssub.s32 %s18, %s30
      %s81 = ssub.s32 %s19, %s26
      %s82 = sor.u32 %s80, %s81
      %p83 = scmp.eq.s32.totalorder %s82, 0
      %s85 = sadd.s32 %s84, 1
      %s86 = scalar_select %p83, %s84, %s85
      %p89 = pneg %p83
      %p90 = scmp.eq.s32.totalorder %s11, 1
      %p91 = por %p89, %p90
      %p92 = scmp.ne.s32.totalorder %s84, %s87
      %p93 = scmp.eq.s32.totalorder %s11, 0
      %p94 = por %p92, %p93
      %p95 = scmp.ne.s32.totalorder %s84, %s87
      %p96 = scmp.eq.s32.totalorder %s16, 1
      %p97 = por %p95, %p96
      %p98 = scmp.ne.s32.totalorder %s87, %s88
      %p99 = scmp.eq.s32.totalorder %s16, 0
      %p100 = por %p98, %p99
      %p101 = scmp.ne.s32.totalorder %s87, %s88
      %p102 = scmp.eq.s32.totalorder %s17, 1
      %p103 = por %p101, %p102
      %p105 = scmp.ne.s32.totalorder %s88, %s104
      %p106 = scmp.eq.s32.totalorder %s17, 0
      %p107 = por %p105, %p106
      %p108 = scmp.le.s32.totalorder 1, %s11
      %p109 = scmp.lt.s32.totalorder %s11, 3
      %p110 = pnand %p108, %p109
      %p111 = pneg %p110
      // Predicated region
      $region9: #{tpu_custom_call.1} parent=5 // pred_check
        _
      $region10: #{tpu_custom_call.1} parent=5 // pred_check_branch
        %113 = sbr.rel (%p110) target = $region12
      $region11: #{tpu_custom_call.1} parent=5 // pred_region
        %s114 = ssub.s32 %s11, 1
        // Predicated region
        $region13: #{tpu_custom_call.1} parent=11 // pred_check
          %p115 = pneg %p44
        $region14: #{tpu_custom_call.1} parent=11 // pred_check_branch
          %117 = sbr.rel (%p115) target = $region16
        $region15: #{tpu_custom_call.1} parent=11 // pred_region
          _
        $region16: #{tpu_custom_call.1} parent=11 // pred_fallthru
          _
      $region12: #{tpu_custom_call.1} parent=5 // pred_fallthru
        _
      %p118 = scmp.lt.s32.totalorder %s11, 2
      // Predicated region
      $region17: #{tpu_custom_call.1} parent=5 // pred_check
        %p119 = pneg %p118
      $region18: #{tpu_custom_call.1} parent=5 // pred_check_branch
        %121 = sbr.rel (%p119) target = $region20
      $region19: #{tpu_custom_call.1} parent=5 // pred_region
        // Predicated region
        $region21: #{tpu_custom_call.1} parent=19 // pred_check
          %p122 = pneg %p66
        $region22: #{tpu_custom_call.1} parent=19 // pred_check_branch
          %124 = sbr.rel (%p122) target = $region24
        $region23: #{tpu_custom_call.1} parent=19 // pred_region
          %p125 = scmp.lt.s32.totalorder %s18, 1
          %s126 = scalar_select %p125, %s18, 1
          %p127 = scmp.lt.s32.totalorder %s19, 0
          %s128 = scalar_select %p127, %s19, 0
          %s129 = sadd.s32 %s128, %s126
          %s130 = smul.addr %s129, 4
          %s131 = scalar_lea.vmem %s1, %s130
        $region24: #{tpu_custom_call.1} parent=19 // pred_fallthru
          _
      $region20: #{tpu_custom_call.1} parent=5 // pred_fallthru
        _
      %p132 = scmp.le.s32.totalorder 1, %s11
      %p133 = scmp.lt.s32.totalorder %s11, 3
      %p134 = pnand %p132, %p133
      %p135 = pneg %p134
      // Predicated region
      $region25: #{tpu_custom_call.1} parent=5 // pred_check
        _
      $region26: #{tpu_custom_call.1} parent=5 // pred_check_branch
        %137 = sbr.rel (%p134) target = $region28
      $region27: #{tpu_custom_call.1} parent=5 // pred_region
        %s138 = ssub.s32 %s11, 1
        %p139 = pneg %p44
        %p140 = pneg %p41
        %p141 = scmp.lt.s32.totalorder %s20, 1
        %s142 = scalar_select %p141, %s20, 1
        %p143 = scmp.lt.s32.totalorder %s21, 0
        %s144 = scalar_select %p143, %s21, 0
        %s145 = sadd.s32 %s144, %s142
        %s146 = smul.addr %s145, 4
        %s147 = scalar_lea.vmem %s1, %s146
        %p148 = pneg %p72
        %p149 = pneg %p69
        %p150 = pneg %p100
        %p151 = pneg %p97
        %s152 = sand.u32 %s87, 1
        %s153 = scalar_lea.sflag [#allocation3], %s152
        %s154 = sand.u32 %s87, 1
        %s155 = smul.addr %s154, 4
        %s156 = scalar_lea.vmem [#allocation2], %s155
        %p157 = scmp.lt.s32.totalorder %s20, 1
        %s158 = scalar_select %p157, %s20, 1
        %p159 = scmp.lt.s32.totalorder %s21, 0
        %s160 = scalar_select %p159, %s21, 0
        %s161 = sadd.s32 %s160, %s158
        %s162 = smul.addr %s161, 4
        %s163 = scalar_lea.vmem %s1, %s162
        %v164 = vld [vmem:[%s0] sm:$0xff]
        %v165 = vld [vmem:[%s0 + $0x8] sm:$0xff]
        %v166 = vld [vmem:[%s163] sm:$0xf]
        %vm167 = vcmask 31744
        %v169 = vsel %vm167, %v164, 0
        %v172 = vsel %vm167, %v165, 0
        %vm174 = vcmask 1043456
        %v176 = vsel %vm174, %v166, 0
        %178 = vmatpush.msra.mxu0 0.0
        %179 = vmatpush.msra.mxu0 0.0
        %180 = vmatpush.msra.mxu0 0.0
        %181 = vmatpush.msra.mxu0 0.0
        %182 = vmatpush.msra.mxu0 0.0
        %183 = vmatpush.msra.mxu0 0.0
        %184 = vmatpush.msra.mxu0 0.0
        %185 = vmatpush.msra.mxu0 0.0
        %186 = vmatpush.msra.mxu0 0.0
        %187 = vmatpush.msra.mxu0 0.0
        %188 = vmatpush.msra.mxu0 0.0
        %189 = vmatpush.msra.mxu0 0.0
        %190 = vmatpush.msra.mxu0 0.0
        %191 = vmatpush.msra.mxu0 0.0
        %192 = vmatpush.msra.mxu0 0.0
        %193 = vmatpush.msra.mxu0 %v176
        %194 = vmatmul.f32.gmra.mxu0 %v169
        %v195 = vpop.f32.mrf.mxu0
        %v196 = vadd.f32 0.0, %v195
        %197 = vmatmul.f32.gmra.mxu0 %v172
        %v198 = vpop.f32.mrf.mxu0
        %v199 = vadd.f32 0.0, %v198
        %200 = vdwg.mxu0
        %v201 = vtanh.pop %v196
        %v202 = vtanh.pop %v199
        %v203 = vmul.f32 %v202, 0.5
        %v204 = vadd.f32 %v203, 0.5
        %v205 = vmul.f32 %v201, %v204
        %vm206 = vcmask 125952
        %207 = vst.msk [vmem:[%s156] sm:$0xf] %vm206, %v205
        %s208 = sand.u32 %s87, 1
        %s209 = scalar_lea.sflag [#allocation3], %s208
        %s210 = sand.u32 %s87, 1
        %s211 = smul.addr %s210, 4
        %s212 = scalar_lea.vmem [#allocation2], %s211
        // Predicated region
        $region29: #{tpu_custom_call.1} parent=27 // pred_check
          %p213 = pneg %p97
        $region30: #{tpu_custom_call.1} parent=27 // pred_check_branch
          %215 = sbr.rel (%p213) target = $region32
        $region31: #{tpu_custom_call.1} parent=27 // pred_region
          %217 = vsyncadd %s209, 0
          %s218 = sadd.s32 %s21, %s20
          %s219 = smul.addr %s218, 4
          %s220 = scalar_lea.hbm %s2, %s219
          %s222 = sshll.u32 %s212, 4
          %s223 = int_to_ptr.vmem [resolvable:$true] %s222
          %s224 = sshll.u32 %s220, 4
          %s225 = int_to_ptr.hbm [resolvable:$true] %s224
          %227 = dma.vmem_to_hbm [thread:$0]  %s223, 64, %s225, %s209
        $region32: #{tpu_custom_call.1} parent=27 // pred_fallthru
          _
      $region28: #{tpu_custom_call.1} parent=5 // pred_fallthru
        _
      %p228 = scmp.le.s32.totalorder 2, %s11
      // Predicated region
      $region33: #{tpu_custom_call.1} parent=5 // pred_check
        %p229 = pneg %p228
      $region34: #{tpu_custom_call.1} parent=5 // pred_check_branch
        %231 = sbr.rel (%p229) target = $region36
      $region35: #{tpu_custom_call.1} parent=5 // pred_region
        %s232 = ssub.s32 %s11, 2
        // Predicated region
        $region37: #{tpu_custom_call.1} parent=35 // pred_check
          %p233 = pneg %p103
        $region38: #{tpu_custom_call.1} parent=35 // pred_check_branch
          %235 = sbr.rel (%p233) target = $region40
        $region39: #{tpu_custom_call.1} parent=35 // pred_region
          %s236 = sand.u32 %s88, 1
          %s237 = scalar_lea.sflag [#allocation3], %s236
          %s238 = sand.u32 %s88, 1
          %s239 = smul.addr %s238, 4
          %s240 = scalar_lea.vmem [#allocation2], %s239
          %242 = dma.done %s237, 64
        $region40: #{tpu_custom_call.1} parent=35 // pred_fallthru
          _
      $region36: #{tpu_custom_call.1} parent=5 // pred_fallthru
        _
    $region6: #{tpu_custom_call.1} parent=1 // loop_footer
      %s15 = sadd.s32 1, %s11
    $region7: #{tpu_custom_call.1} parent=1 // loop_footer_branch
      %10 = sbr.rel target = $region3
    $region8: #{tpu_custom_call.1} parent=1 // loop_exit
      _
    %243 = vsyncpa [#allocation3], 1
    %s244 = scalar_lea.sflag [#allocation3], 1
    %245 = vsyncpa %s244, 1

</llo_original>
